<compile_context>
chip_gen: v6e
topology: v6e:2x2x1
jax: 0.10.0
libtpu: 0.0.40
codegen_flags: <defaults>
</compile_context>

<pallas_src>
import functools

import jax
import jax.numpy as jnp
from jax.experimental import pallas as pl
from jax.experimental.pallas import tpu as pltpu


def _round_up(x, m):
    return ((x + m - 1) // m) * m


def ae_forward_kernel(x_ref, w_ref, b_ref, out_ref, *, fpad, compute_dtype):
    # x_ref:   [TB, F]       f32   (features zero-padded to F)
    # w_ref:   [8, F, F]     compute_dtype, layout [in, out], zero-padded
    # b_ref:   [8, 1, F]     f32, zero-padded
    # out_ref: [TB, 5*F]     f32   = x_bar | h1 | h2 | h3 | z
    def linear(h, layer, relu):
        y = jnp.dot(h.astype(compute_dtype), w_ref[layer],
                    preferred_element_type=jnp.float32)
        y = y + b_ref[layer]              # f32 bias add on the VPU
        if relu:
            y = jnp.maximum(y, 0.0)
        return y

    x = x_ref[...]
    h1 = linear(x, 0, True)
    h2 = linear(h1, 1, True)
    h3 = linear(h2, 2, True)
    z = linear(h3, 3, False)
    d1 = linear(z, 4, True)
    d2 = linear(d1, 5, True)
    d3 = linear(d2, 6, True)
    x_bar = linear(d3, 7, False)

    # 128-lane-aligned slices of a lane-dense slab -> unmasked vector stores.
    out_ref[:, 0 * fpad:1 * fpad] = x_bar
    out_ref[:, 1 * fpad:2 * fpad] = h1
    out_ref[:, 2 * fpad:3 * fpad] = h2
    out_ref[:, 3 * fpad:4 * fpad] = h3
    out_ref[:, 4 * fpad:5 * fpad] = z


def ae_forward(x, params, *, block_b=256, compute_dtype=jnp.bfloat16):
    """x: [B, n_input] f32. params: flat list [W1, b1, ..., W8, b8] with
    Wi of shape [in, out] (PyTorch W.T) and bi of shape [1, out]."""
    B, n_input = x.shape
    Ws = params[0::2]
    Bs = params[1::2]
    n_layers = len(Ws)
    dims = [w.shape for w in Ws]                       # [(in, out), ...]
    fpad = _round_up(max([n_input] + [d[1] for d in dims]), 128)

    # output widths in return order (x_bar, h1, h2, h3, z)
    out_sizes = [dims[7][1], dims[0][1], dims[1][1], dims[2][1], dims[3][1]]

    TB = min(block_b, _round_up(B, 8))                 # batch tile (mult. of 8)
    B_pad = _round_up(B, TB)

    # Pack parameters into one weight slab + one bias slab. Zero padding keeps
    # all padded lanes exactly 0 through every layer (0*W + 0 bias, ReLU(0)=0).
    wbuf = jnp.zeros((n_layers, fpad, fpad), compute_dtype)
    bbuf = jnp.zeros((n_layers, 1, fpad), jnp.float32)
    for i, (w, b) in enumerate(zip(Ws, Bs)):
        fi, fo = w.shape
        wbuf = wbuf.at[i, :fi, :fo].set(w.astype(compute_dtype))
        bbuf = bbuf.at[i, 0, :fo].set(b.reshape(-1).astype(jnp.float32))

    x_pad = jnp.zeros((B_pad, fpad), jnp.float32).at[:B, :n_input].set(x)

    kernel = functools.partial(ae_forward_kernel, fpad=fpad,
                               compute_dtype=compute_dtype)

    flops = 2 * B * sum(fi * fo for fi, fo in dims)
    bytes_accessed = (x.size * 4
                      + sum(p.size * p.dtype.itemsize for p in params)
                      + B * sum(out_sizes) * 4)

    slab = pl.pallas_call(
        kernel,
        out_shape=jax.ShapeDtypeStruct((B_pad, 5 * fpad), jnp.float32),
        grid=(B_pad // TB,),
        in_specs=[
            pl.BlockSpec((TB, fpad), lambda i: (i, 0)),                 # x tile
            pl.BlockSpec((n_layers, fpad, fpad), lambda i: (0, 0, 0)),  # weights (resident)
            pl.BlockSpec((n_layers, 1, fpad), lambda i: (0, 0, 0)),     # biases  (resident)
        ],
        out_specs=pl.BlockSpec((TB, 5 * fpad), lambda i: (i, 0)),
        compiler_params=pltpu.CompilerParams(
            dimension_semantics=("parallel",)),
        cost_estimate=pl.CostEstimate(flops=flops, transcendentals=0,
                                      bytes_accessed=bytes_accessed),
    )(x_pad, wbuf, bbuf)

    x_bar = slab[:B, 0 * fpad:0 * fpad + out_sizes[0]]
    h1 = slab[:B, 1 * fpad:1 * fpad + out_sizes[1]]
    h2 = slab[:B, 2 * fpad:2 * fpad + out_sizes[2]]
    h3 = slab[:B, 3 * fpad:3 * fpad + out_sizes[3]]
    z = slab[:B, 4 * fpad:4 * fpad + out_sizes[4]]
    return x_bar, h1, h2, h3, z


def init_params(key, n_enc_1, n_enc_2, n_enc_3, n_dec_1, n_dec_2, n_dec_3,
                n_input, n_z):
    """PyTorch-Linear-style init (uniform +-1/sqrt(fan_in)); weights stored
    transposed as [in, out]."""
    dims = [
        (n_input, n_enc_1), (n_enc_1, n_enc_2), (n_enc_2, n_enc_3),
        (n_enc_3, n_z),
        (n_z, n_dec_1), (n_dec_1, n_dec_2), (n_dec_2, n_dec_3),
        (n_dec_3, n_input),
    ]
    params = []
    for (fan_in, fan_out) in dims:
        key, kw, kb = jax.random.split(key, 3)
        bound = 1.0 / jnp.sqrt(float(fan_in))
        w = jax.random.uniform(kw, (fan_in, fan_out), jnp.float32, -bound, bound)
        b = jax.random.uniform(kb, (1, fan_out), jnp.float32, -bound, bound)
        params += [w, b]
    return params


if __name__ == "__main__":
    B = 8
    n_input, n_z = 16, 8
    n_enc_1, n_enc_2, n_enc_3 = 32, 32, 64
    n_dec_1, n_dec_2, n_dec_3 = 64, 32, 32

    key = jax.random.PRNGKey(0)
    key, kx = jax.random.split(key)
    x = jax.random.normal(kx, (B, n_input), jnp.float32)
    params = init_params(key, n_enc_1, n_enc_2, n_enc_3,
                         n_dec_1, n_dec_2, n_dec_3, n_input, n_z)

    fwd_bf16 = jax.jit(functools.partial(ae_forward, compute_dtype=jnp.bfloat16))
    fwd_f32 = jax.jit(functools.partial(ae_forward, compute_dtype=jnp.float32))

    outs_bf16 = fwd_bf16(x, params)
    outs_f32 = fwd_f32(x, params)
    jax.block_until_ready((outs_bf16, outs_f32))

    # Pure-JAX reference.
    def ref(x, params):
        W = params[0::2]
        Bs = params[1::2]
        h1 = jnp.maximum(x @ W[0] + Bs[0], 0.0)
        h2 = jnp.maximum(h1 @ W[1] + Bs[1], 0.0)
        h3 = jnp.maximum(h2 @ W[2] + Bs[2], 0.0)
        zz = h3 @ W[3] + Bs[3]
        d1 = jnp.maximum(zz @ W[4] + Bs[4], 0.0)
        d2 = jnp.maximum(d1 @ W[5] + Bs[5], 0.0)
        d3 = jnp.maximum(d2 @ W[6] + Bs[6], 0.0)
        xb = d3 @ W[7] + Bs[7]
        return xb, h1, h2, h3, zz

    refs = ref(x, params)
    for got, want in zip(outs_f32, refs):
        assert got.shape == want.shape
        assert jnp.allclose(got, want, atol=1e-4, rtol=1e-4)
    for got, want in zip(outs_bf16, refs):
        assert got.shape == want.shape
        assert jnp.allclose(got, want, atol=5e-2, rtol=5e-2)

    print("KERNEL_OK")
</pallas_src>

<mosaic_0001>
module attributes {stable_mosaic.version = 11 : i64} {
  func.func @ae_forward_kernel(%arg0: i32, %arg1: memref<8x128xf32, #tpu.memory_space<vmem>>, %arg2: memref<8x128x128xbf16, #tpu.memory_space<vmem>>, %arg3: memref<8x1x128xf32, #tpu.memory_space<vmem>>, %arg4: memref<8x640xf32, #tpu.memory_space<vmem>>) attributes {dimension_semantics = [#tpu.dimension_semantics<parallel>], iteration_bounds = array<i64: 1>, scalar_prefetch = 0 : i64, scratch_operands = 0 : i64, tpu.core_type = #tpu.core_type<tc>, window_params = [{transform_indices = @transform_0, window_bounds = array<i64: 8, 128>}, {pipeline_mode = #tpu.pipeline_mode<synchronous>, transform_indices = @transform_1, window_bounds = array<i64: 8, 128, 128>}, {pipeline_mode = #tpu.pipeline_mode<synchronous>, transform_indices = @transform_2, window_bounds = array<i64: 8, 1, 128>}, {transform_indices = @transform_3, window_bounds = array<i64: 8, 640>}]} {
    %c0 = arith.constant 0 : index
    %c0_0 = arith.constant 0 : index
    %0 = vector.load %arg1[%c0, %c0_0] : memref<8x128xf32, #tpu.memory_space<vmem>>, vector<8x128xf32>
    %1 = arith.truncf %0 : vector<8x128xf32> to vector<8x128xbf16>
    %c0_1 = arith.constant 0 : index
    %c0_2 = arith.constant 0 : index
    %c0_3 = arith.constant 0 : index
    %2 = vector.load %arg2[%c0_1, %c0_2, %c0_3] : memref<8x128x128xbf16, #tpu.memory_space<vmem>>, vector<1x128x128xbf16>
    %3 = vector.shape_cast %2 : vector<1x128x128xbf16> to vector<128x128xbf16>
    %cst = arith.constant dense<0.000000e+00> : vector<8x128xf32>
    %4 = tpu.matmul %1, %3, %cst {dimension_numbers = #tpu.dot_dimension_numbers<[1], [0], [0], [1], [0, 0, 1, 1], [], []>} : vector<8x128xbf16>, vector<128x128xbf16>, vector<8x128xf32> -> vector<8x128xf32>
    %c0_4 = arith.constant 0 : index
    %c0_5 = arith.constant 0 : index
    %c0_6 = arith.constant 0 : index
    %5 = vector.load %arg3[%c0_4, %c0_5, %c0_6] : memref<8x1x128xf32, #tpu.memory_space<vmem>>, vector<1x1x128xf32>
    %6 = vector.shape_cast %5 : vector<1x1x128xf32> to vector<1x128xf32>
    %7 = vector.broadcast %6 : vector<1x128xf32> to vector<8x128xf32>
    %8 = arith.addf %4, %7 : vector<8x128xf32>
    %cst_7 = arith.constant 0.000000e+00 : f32
    %9 = vector.broadcast %cst_7 : f32 to vector<8x128xf32>
    %10 = arith.maximumf %8, %9 : vector<8x128xf32>
    %11 = arith.truncf %10 : vector<8x128xf32> to vector<8x128xbf16>
    %c1 = arith.constant 1 : index
    %c0_8 = arith.constant 0 : index
    %c0_9 = arith.constant 0 : index
    %12 = vector.load %arg2[%c1, %c0_8, %c0_9] : memref<8x128x128xbf16, #tpu.memory_space<vmem>>, vector<1x128x128xbf16>
    %13 = vector.shape_cast %12 : vector<1x128x128xbf16> to vector<128x128xbf16>
    %cst_10 = arith.constant dense<0.000000e+00> : vector<8x128xf32>
    %14 = tpu.matmul %11, %13, %cst_10 {dimension_numbers = #tpu.dot_dimension_numbers<[1], [0], [0], [1], [0, 0, 1, 1], [], []>} : vector<8x128xbf16>, vector<128x128xbf16>, vector<8x128xf32> -> vector<8x128xf32>
    %c1_11 = arith.constant 1 : index
    %c0_12 = arith.constant 0 : index
    %c0_13 = arith.constant 0 : index
    %15 = vector.load %arg3[%c1_11, %c0_12, %c0_13] : memref<8x1x128xf32, #tpu.memory_space<vmem>>, vector<1x1x128xf32>
    %16 = vector.shape_cast %15 : vector<1x1x128xf32> to vector<1x128xf32>
    %17 = vector.broadcast %16 : vector<1x128xf32> to vector<8x128xf32>
    %18 = arith.addf %14, %17 : vector<8x128xf32>
    %cst_14 = arith.constant 0.000000e+00 : f32
    %19 = vector.broadcast %cst_14 : f32 to vector<8x128xf32>
    %20 = arith.maximumf %18, %19 : vector<8x128xf32>
    %21 = arith.truncf %20 : vector<8x128xf32> to vector<8x128xbf16>
    %c2 = arith.constant 2 : index
    %c0_15 = arith.constant 0 : index
    %c0_16 = arith.constant 0 : index
    %22 = vector.load %arg2[%c2, %c0_15, %c0_16] : memref<8x128x128xbf16, #tpu.memory_space<vmem>>, vector<1x128x128xbf16>
    %23 = vector.shape_cast %22 : vector<1x128x128xbf16> to vector<128x128xbf16>
    %cst_17 = arith.constant dense<0.000000e+00> : vector<8x128xf32>
    %24 = tpu.matmul %21, %23, %cst_17 {dimension_numbers = #tpu.dot_dimension_numbers<[1], [0], [0], [1], [0, 0, 1, 1], [], []>} : vector<8x128xbf16>, vector<128x128xbf16>, vector<8x128xf32> -> vector<8x128xf32>
    %c2_18 = arith.constant 2 : index
    %c0_19 = arith.constant 0 : index
    %c0_20 = arith.constant 0 : index
    %25 = vector.load %arg3[%c2_18, %c0_19, %c0_20] : memref<8x1x128xf32, #tpu.memory_space<vmem>>, vector<1x1x128xf32>
    %26 = vector.shape_cast %25 : vector<1x1x128xf32> to vector<1x128xf32>
    %27 = vector.broadcast %26 : vector<1x128xf32> to vector<8x128xf32>
    %28 = arith.addf %24, %27 : vector<8x128xf32>
    %cst_21 = arith.constant 0.000000e+00 : f32
    %29 = vector.broadcast %cst_21 : f32 to vector<8x128xf32>
    %30 = arith.maximumf %28, %29 : vector<8x128xf32>
    %31 = arith.truncf %30 : vector<8x128xf32> to vector<8x128xbf16>
    %c3 = arith.constant 3 : index
    %c0_22 = arith.constant 0 : index
    %c0_23 = arith.constant 0 : index
    %32 = vector.load %arg2[%c3, %c0_22, %c0_23] : memref<8x128x128xbf16, #tpu.memory_space<vmem>>, vector<1x128x128xbf16>
    %33 = vector.shape_cast %32 : vector<1x128x128xbf16> to vector<128x128xbf16>
    %cst_24 = arith.constant dense<0.000000e+00> : vector<8x128xf32>
    %34 = tpu.matmul %31, %33, %cst_24 {dimension_numbers = #tpu.dot_dimension_numbers<[1], [0], [0], [1], [0, 0, 1, 1], [], []>} : vector<8x128xbf16>, vector<128x128xbf16>, vector<8x128xf32> -> vector<8x128xf32>
    %c3_25 = arith.constant 3 : index
    %c0_26 = arith.constant 0 : index
    %c0_27 = arith.constant 0 : index
    %35 = vector.load %arg3[%c3_25, %c0_26, %c0_27] : memref<8x1x128xf32, #tpu.memory_space<vmem>>, vector<1x1x128xf32>
    %36 = vector.shape_cast %35 : vector<1x1x128xf32> to vector<1x128xf32>
    %37 = vector.broadcast %36 : vector<1x128xf32> to vector<8x128xf32>
    %38 = arith.addf %34, %37 : vector<8x128xf32>
    %39 = arith.truncf %38 : vector<8x128xf32> to vector<8x128xbf16>
    %c4 = arith.constant 4 : index
    %c0_28 = arith.constant 0 : index
    %c0_29 = arith.constant 0 : index
    %40 = vector.load %arg2[%c4, %c0_28, %c0_29] : memref<8x128x128xbf16, #tpu.memory_space<vmem>>, vector<1x128x128xbf16>
    %41 = vector.shape_cast %40 : vector<1x128x128xbf16> to vector<128x128xbf16>
    %cst_30 = arith.constant dense<0.000000e+00> : vector<8x128xf32>
    %42 = tpu.matmul %39, %41, %cst_30 {dimension_numbers = #tpu.dot_dimension_numbers<[1], [0], [0], [1], [0, 0, 1, 1], [], []>} : vector<8x128xbf16>, vector<128x128xbf16>, vector<8x128xf32> -> vector<8x128xf32>
    %c4_31 = arith.constant 4 : index
    %c0_32 = arith.constant 0 : index
    %c0_33 = arith.constant 0 : index
    %43 = vector.load %arg3[%c4_31, %c0_32, %c0_33] : memref<8x1x128xf32, #tpu.memory_space<vmem>>, vector<1x1x128xf32>
    %44 = vector.shape_cast %43 : vector<1x1x128xf32> to vector<1x128xf32>
    %45 = vector.broadcast %44 : vector<1x128xf32> to vector<8x128xf32>
    %46 = arith.addf %42, %45 : vector<8x128xf32>
    %cst_34 = arith.constant 0.000000e+00 : f32
    %47 = vector.broadcast %cst_34 : f32 to vector<8x128xf32>
    %48 = arith.maximumf %46, %47 : vector<8x128xf32>
    %49 = arith.truncf %48 : vector<8x128xf32> to vector<8x128xbf16>
    %c5 = arith.constant 5 : index
    %c0_35 = arith.constant 0 : index
    %c0_36 = arith.constant 0 : index
    %50 = vector.load %arg2[%c5, %c0_35, %c0_36] : memref<8x128x128xbf16, #tpu.memory_space<vmem>>, vector<1x128x128xbf16>
    %51 = vector.shape_cast %50 : vector<1x128x128xbf16> to vector<128x128xbf16>
    %cst_37 = arith.constant dense<0.000000e+00> : vector<8x128xf32>
    %52 = tpu.matmul %49, %51, %cst_37 {dimension_numbers = #tpu.dot_dimension_numbers<[1], [0], [0], [1], [0, 0, 1, 1], [], []>} : vector<8x128xbf16>, vector<128x128xbf16>, vector<8x128xf32> -> vector<8x128xf32>
    %c5_38 = arith.constant 5 : index
    %c0_39 = arith.constant 0 : index
    %c0_40 = arith.constant 0 : index
    %53 = vector.load %arg3[%c5_38, %c0_39, %c0_40] : memref<8x1x128xf32, #tpu.memory_space<vmem>>, vector<1x1x128xf32>
    %54 = vector.shape_cast %53 : vector<1x1x128xf32> to vector<1x128xf32>
    %55 = vector.broadcast %54 : vector<1x128xf32> to vector<8x128xf32>
    %56 = arith.addf %52, %55 : vector<8x128xf32>
    %cst_41 = arith.constant 0.000000e+00 : f32
    %57 = vector.broadcast %cst_41 : f32 to vector<8x128xf32>
    %58 = arith.maximumf %56, %57 : vector<8x128xf32>
    %59 = arith.truncf %58 : vector<8x128xf32> to vector<8x128xbf16>
    %c6 = arith.constant 6 : index
    %c0_42 = arith.constant 0 : index
    %c0_43 = arith.constant 0 : index
    %60 = vector.load %arg2[%c6, %c0_42, %c0_43] : memref<8x128x128xbf16, #tpu.memory_space<vmem>>, vector<1x128x128xbf16>
    %61 = vector.shape_cast %60 : vector<1x128x128xbf16> to vector<128x128xbf16>
    %cst_44 = arith.constant dense<0.000000e+00> : vector<8x128xf32>
    %62 = tpu.matmul %59, %61, %cst_44 {dimension_numbers = #tpu.dot_dimension_numbers<[1], [0], [0], [1], [0, 0, 1, 1], [], []>} : vector<8x128xbf16>, vector<128x128xbf16>, vector<8x128xf32> -> vector<8x128xf32>
    %c6_45 = arith.constant 6 : index
    %c0_46 = arith.constant 0 : index
    %c0_47 = arith.constant 0 : index
    %63 = vector.load %arg3[%c6_45, %c0_46, %c0_47] : memref<8x1x128xf32, #tpu.memory_space<vmem>>, vector<1x1x128xf32>
    %64 = vector.shape_cast %63 : vector<1x1x128xf32> to vector<1x128xf32>
    %65 = vector.broadcast %64 : vector<1x128xf32> to vector<8x128xf32>
    %66 = arith.addf %62, %65 : vector<8x128xf32>
    %cst_48 = arith.constant 0.000000e+00 : f32
    %67 = vector.broadcast %cst_48 : f32 to vector<8x128xf32>
    %68 = arith.maximumf %66, %67 : vector<8x128xf32>
    %69 = arith.truncf %68 : vector<8x128xf32> to vector<8x128xbf16>
    %c7 = arith.constant 7 : index
    %c0_49 = arith.constant 0 : index
    %c0_50 = arith.constant 0 : index
    %70 = vector.load %arg2[%c7, %c0_49, %c0_50] : memref<8x128x128xbf16, #tpu.memory_space<vmem>>, vector<1x128x128xbf16>
    %71 = vector.shape_cast %70 : vector<1x128x128xbf16> to vector<128x128xbf16>
    %cst_51 = arith.constant dense<0.000000e+00> : vector<8x128xf32>
    %72 = tpu.matmul %69, %71, %cst_51 {dimension_numbers = #tpu.dot_dimension_numbers<[1], [0], [0], [1], [0, 0, 1, 1], [], []>} : vector<8x128xbf16>, vector<128x128xbf16>, vector<8x128xf32> -> vector<8x128xf32>
    %c7_52 = arith.constant 7 : index
    %c0_53 = arith.constant 0 : index
    %c0_54 = arith.constant 0 : index
    %73 = vector.load %arg3[%c7_52, %c0_53, %c0_54] : memref<8x1x128xf32, #tpu.memory_space<vmem>>, vector<1x1x128xf32>
    %74 = vector.shape_cast %73 : vector<1x1x128xf32> to vector<1x128xf32>
    %75 = vector.broadcast %74 : vector<1x128xf32> to vector<8x128xf32>
    %76 = arith.addf %72, %75 : vector<8x128xf32>
    %c0_55 = arith.constant 0 : index
    %c0_56 = arith.constant 0 : index
    %77 = vector.load %arg4[%c0_55, %c0_56] : memref<8x640xf32, #tpu.memory_space<vmem>>, vector<8x128xf32>
    tpu.vector_store %arg4[%c0_55, %c0_56], %76 {strides = array<i32>} : memref<8x640xf32, #tpu.memory_space<vmem>>, vector<8x128xf32>,
    %c0_57 = arith.constant 0 : index
    %c128 = arith.constant 128 : index
    %78 = vector.load %arg4[%c0_57, %c128] : memref<8x640xf32, #tpu.memory_space<vmem>>, vector<8x128xf32>
    tpu.vector_store %arg4[%c0_57, %c128], %10 {strides = array<i32>} : memref<8x640xf32, #tpu.memory_space<vmem>>, vector<8x128xf32>,
    %c0_58 = arith.constant 0 : index
    %c256 = arith.constant 256 : index
    %79 = vector.load %arg4[%c0_58, %c256] : memref<8x640xf32, #tpu.memory_space<vmem>>, vector<8x128xf32>
    tpu.vector_store %arg4[%c0_58, %c256], %20 {strides = array<i32>} : memref<8x640xf32, #tpu.memory_space<vmem>>, vector<8x128xf32>,
    %c0_59 = arith.constant 0 : index
    %c384 = arith.constant 384 : index
    %80 = vector.load %arg4[%c0_59, %c384] : memref<8x640xf32, #tpu.memory_space<vmem>>, vector<8x128xf32>
    tpu.vector_store %arg4[%c0_59, %c384], %30 {strides = array<i32>} : memref<8x640xf32, #tpu.memory_space<vmem>>, vector<8x128xf32>,
    %c0_60 = arith.constant 0 : index
    %c512 = arith.constant 512 : index
    %81 = vector.load %arg4[%c0_60, %c512] : memref<8x640xf32, #tpu.memory_space<vmem>>, vector<8x128xf32>
    tpu.vector_store %arg4[%c0_60, %c512], %38 {strides = array<i32>} : memref<8x640xf32, #tpu.memory_space<vmem>>, vector<8x128xf32>,
    return
  }
  func.func @transform_0(%arg0: i32) -> (i32, i32) {
    %c0_i32 = arith.constant 0 : i32
    %c0_i32_0 = arith.constant 0 : i32
    return %arg0, %c0_i32 : i32, i32
  }
  func.func @transform_1(%arg0: i32) -> (i32, i32, i32) {
    %c0_i32 = arith.constant 0 : i32
    %c0_i32_0 = arith.constant 0 : i32
    %c0_i32_1 = arith.constant 0 : i32
    %c0_i32_2 = arith.constant 0 : i32
    return %c0_i32, %c0_i32_0, %c0_i32_1 : i32, i32, i32
  }
  func.func @transform_2(%arg0: i32) -> (i32, i32, i32) {
    %c0_i32 = arith.constant 0 : i32
    %c0_i32_0 = arith.constant 0 : i32
    %c0_i32_1 = arith.constant 0 : i32
    %c0_i32_2 = arith.constant 0 : i32
    return %c0_i32, %c0_i32_0, %c0_i32_1 : i32, i32, i32
  }
  func.func @transform_3(%arg0: i32) -> (i32, i32) {
    %c0_i32 = arith.constant 0 : i32
    %c0_i32_0 = arith.constant 0 : i32
    return %arg0, %c0_i32 : i32, i32
  }
}

</mosaic_0001>

<llo_original>
// kernel: ae_forward.1
$region0: #{ae_forward.1}
  #allocation0 [shape = 'u32[]', space=smem, size = 0x4, offset = 0x4, fixed_abs, tag = 'smem constant byte address 0x4 - core index']
  #allocation1 [shape = 'u32[144,128]{1,0:T(1,128)}', space=vmem, size = 0x12000, scoped, tag = 'internal scratch']
  %s0 = inlined_call_operand.vmem [shape: f32[8,128], index: 0, kind: input, shape index: {}]
  %s1 = inlined_call_operand.vmem [shape: bf16[8,128,128], index: 1, kind: input, shape index: {}]
  %s2 = inlined_call_operand.vmem [shape: f32[8,1,128], index: 2, kind: input, shape index: {}]
  %s3 = inlined_call_operand.vmem [shape: f32[8,640], index: 3, kind: output, shape index: {}]
  %s4 = sld [smem:[#allocation0]]
  $region22: #{ae_forward.1} parent=0
    _
  %s6 = ssub.s32 1, %s4
  %s7 = scalar_select 0, %s6, %s4
  // Predicated region
  $region2: #{ae_forward.1} parent=0 // pred_check
    _
  $region3: #{ae_forward.1} parent=0 // pred_check_branch
    %9 = sbr.rel (0) target = $region5
  $region4: #{ae_forward.1} parent=0 // pred_region
    _
  $region5: #{ae_forward.1} parent=0 // pred_fallthru
    _
  // Predicated region
  $region6: #{ae_forward.1} parent=0 // pred_check
    _
  $region7: #{ae_forward.1} parent=0 // pred_check_branch
    %11 = sbr.rel (0) target = $region9
  $region8: #{ae_forward.1} parent=0 // pred_region
    _
  $region9: #{ae_forward.1} parent=0 // pred_fallthru
    _
  // Predicated region
  $region10: #{ae_forward.1} parent=0 // pred_check
    _
  $region11: #{ae_forward.1} parent=0 // pred_check_branch
    %13 = sbr.rel (0) target = $region13
  $region12: #{ae_forward.1} parent=0 // pred_region
    _
  $region13: #{ae_forward.1} parent=0 // pred_fallthru
    _
  %v15 = vld [vmem:[%s0] sm:$0xff]
  %v16 = vpack.c.bf16 %v15, %v15
  %v17 = vld [vmem:[%s1] sm:$0xf]
  %v18 = vld [vmem:[%s1 + $0x4] sm:$0xf]
  %v19 = vld [vmem:[%s1 + $0x8] sm:$0xf]
  %v20 = vld [vmem:[%s1 + $0xc] sm:$0xf]
  %v21 = vld [vmem:[%s1 + $0x10] sm:$0xf]
  %v22 = vld [vmem:[%s1 + $0x14] sm:$0xf]
  %v23 = vld [vmem:[%s1 + $0x18] sm:$0xf]
  %v24 = vld [vmem:[%s1 + $0x1c] sm:$0xf]
  %v25 = vld [vmem:[%s1 + $0x20] sm:$0xf]
  %v26 = vld [vmem:[%s1 + $0x24] sm:$0xf]
  %v27 = vld [vmem:[%s1 + $0x28] sm:$0xf]
  %v28 = vld [vmem:[%s1 + $0x2c] sm:$0xf]
  %v29 = vld [vmem:[%s1 + $0x30] sm:$0xf]
  %v30 = vld [vmem:[%s1 + $0x34] sm:$0xf]
  %v31 = vld [vmem:[%s1 + $0x38] sm:$0xf]
  %v32 = vld [vmem:[%s1 + $0x3c] sm:$0xf]
  %v33 = vld [vmem:[%s2] sm:$0x1]
  %v35 = vlaneseq
  %v36 = vshrl.u32 %v35, 7
  %v37 = vsub.s32 0, %v36
  %v38 = vrot.slane %v33, %v37
  %v56 = vunpack.c.l.b16 %v17
  %v57 = vunpack.c.l.b16 %v18
  %v58 = vunpack.c.l.b16 %v19
  %v59 = vunpack.c.l.b16 %v20
  %v60 = vunpack.c.l.b16 %v21
  %v61 = vunpack.c.l.b16 %v22
  %v62 = vunpack.c.l.b16 %v23
  %v63 = vunpack.c.l.b16 %v24
  %v64 = vunpack.c.l.b16 %v25
  %v65 = vunpack.c.l.b16 %v26
  %v66 = vunpack.c.l.b16 %v27
  %v67 = vunpack.c.l.b16 %v28
  %v68 = vunpack.c.l.b16 %v29
  %v69 = vunpack.c.l.b16 %v30
  %v70 = vunpack.c.l.b16 %v31
  %v71 = vunpack.c.l.b16 %v32
  %v72 = vpack.c.b16 %v57, %v56
  %v73 = vpack.c.b16 %v59, %v58
  %v74 = vpack.c.b16 %v61, %v60
  %v75 = vpack.c.b16 %v63, %v62
  %v76 = vpack.c.b16 %v65, %v64
  %v77 = vpack.c.b16 %v67, %v66
  %v78 = vpack.c.b16 %v69, %v68
  %v79 = vpack.c.b16 %v71, %v70
  %88 = vmatprep.subr.bf16.mxu0 0
  %89 = vmatpush1.bf16.msra.mxu0 %v79
  %90 = vmatprep.subr.bf16.mxu0 0
  %91 = vmatpush1.bf16.msra.mxu0 %v78
  %92 = vmatprep.subr.bf16.mxu0 0
  %93 = vmatpush1.bf16.msra.mxu0 %v77
  %94 = vmatprep.subr.bf16.mxu0 0
  %95 = vmatpush1.bf16.msra.mxu0 %v76
  %96 = vmatprep.subr.bf16.mxu0 0
  %97 = vmatpush1.bf16.msra.mxu0 %v75
  %98 = vmatprep.subr.bf16.mxu0 0
  %99 = vmatpush1.bf16.msra.mxu0 %v74
  %100 = vmatprep.subr.bf16.mxu0 0
  %101 = vmatpush1.bf16.msra.mxu0 %v73
  %102 = vmatprep.subr.bf16.mxu0 0
  %103 = vmatpush1.bf16.msra.mxu0 %v72
  %104 = vmatprep.subr.bf16.mxu0 0
  %105 = vmatpush2.bf16.msra.mxu0 0
  %106 = vmatprep.subr.bf16.mxu0 0
  %107 = vmatpush2.bf16.msra.mxu0 0
  %108 = vmatprep.subr.bf16.mxu0 0
  %109 = vmatpush2.bf16.msra.mxu0 0
  %110 = vmatprep.subr.bf16.mxu0 0
  %111 = vmatpush2.bf16.msra.mxu0 0
  %112 = vmatprep.subr.bf16.mxu0 0
  %113 = vmatpush2.bf16.msra.mxu0 0
  %114 = vmatprep.subr.bf16.mxu0 0
  %115 = vmatpush2.bf16.msra.mxu0 0
  %116 = vmatprep.subr.bf16.mxu0 0
  %117 = vmatpush2.bf16.msra.mxu0 0
  %118 = vmatprep.subr.bf16.mxu0 0
  %119 = vmatpush2.bf16.msra.mxu0 0
  %120 = vmatprep.mubr.bf16.mxu0 0
  %121 = vmatmul.mubr.bf16.gmra.mxu0 %v16
  %v122 = vpop.f32.mrf.mxu0
  %v123 = vadd.f32 %v38, %v122
  %v124 = vpop.f32.mrf.mxu0
  %v125 = vpop.f32.mrf.mxu0
  %v126 = vpop.f32.mrf.mxu0
  %127 = vdwg.mxu0
  %v128 = vmax.f32 %v123, 0.0
  %v129 = vpack.c.bf16 %v128, %v128
  %s130 = scalar_lea.vmem %s1, 64
  %v131 = vld [vmem:[%s130] sm:$0xf]
  %v132 = vld [vmem:[%s130 + $0x4] sm:$0xf]
  %v133 = vld [vmem:[%s130 + $0x8] sm:$0xf]
  %v134 = vld [vmem:[%s130 + $0xc] sm:$0xf]
  %v135 = vld [vmem:[%s130 + $0x10] sm:$0xf]
  %v136 = vld [vmem:[%s130 + $0x14] sm:$0xf]
  %v137 = vld [vmem:[%s130 + $0x18] sm:$0xf]
  %v138 = vld [vmem:[%s130 + $0x1c] sm:$0xf]
  %v139 = vld [vmem:[%s130 + $0x20] sm:$0xf]
  %v140 = vld [vmem:[%s130 + $0x24] sm:$0xf]
  %v141 = vld [vmem:[%s130 + $0x28] sm:$0xf]
  %v142 = vld [vmem:[%s130 + $0x2c] sm:$0xf]
  %v143 = vld [vmem:[%s130 + $0x30] sm:$0xf]
  %v144 = vld [vmem:[%s130 + $0x34] sm:$0xf]
  %v145 = vld [vmem:[%s130 + $0x38] sm:$0xf]
  %v146 = vld [vmem:[%s130 + $0x3c] sm:$0xf]
  %s147 = scalar_lea.vmem %s2, 1
  %v148 = vld [vmem:[%s147] sm:$0x1]
  %v150 = vlaneseq
  %v151 = vshrl.u32 %v150, 7
  %v152 = vsub.s32 0, %v151
  %v153 = vrot.slane %v148, %v152
  %v171 = vunpack.c.l.b16 %v131
  %v172 = vunpack.c.l.b16 %v132
  %v173 = vunpack.c.l.b16 %v133
  %v174 = vunpack.c.l.b16 %v134
  %v175 = vunpack.c.l.b16 %v135
  %v176 = vunpack.c.l.b16 %v136
  %v177 = vunpack.c.l.b16 %v137
  %v178 = vunpack.c.l.b16 %v138
  %v179 = vunpack.c.l.b16 %v139
  %v180 = vunpack.c.l.b16 %v140
  %v181 = vunpack.c.l.b16 %v141
  %v182 = vunpack.c.l.b16 %v142
  %v183 = vunpack.c.l.b16 %v143
  %v184 = vunpack.c.l.b16 %v144
  %v185 = vunpack.c.l.b16 %v145
  %v186 = vunpack.c.l.b16 %v146
  %v187 = vpack.c.b16 %v172, %v171
  %v188 = vpack.c.b16 %v174, %v173
  %v189 = vpack.c.b16 %v176, %v175
  %v190 = vpack.c.b16 %v178, %v177
  %v191 = vpack.c.b16 %v180, %v179
  %v192 = vpack.c.b16 %v182, %v181
  %v193 = vpack.c.b16 %v184, %v183
  %v194 = vpack.c.b16 %v186, %v185
  %203 = vmatprep.subr.bf16.mxu0 0
  %204 = vmatpush1.bf16.msra.mxu0 %v194
  %205 = vmatprep.subr.bf16.mxu0 0
  %206 = vmatpush1.bf16.msra.mxu0 %v193
  %207 = vmatprep.subr.bf16.mxu0 0
  %208 = vmatpush1.bf16.msra.mxu0 %v192
  %209 = vmatprep.subr.bf16.mxu0 0
  %210 = vmatpush1.bf16.msra.mxu0 %v191
  %211 = vmatprep.subr.bf16.mxu0 0
  %212 = vmatpush1.bf16.msra.mxu0 %v190
  %213 = vmatprep.subr.bf16.mxu0 0
  %214 = vmatpush1.bf16.msra.mxu0 %v189
  %215 = vmatprep.subr.bf16.mxu0 0
  %216 = vmatpush1.bf16.msra.mxu0 %v188
  %217 = vmatprep.subr.bf16.mxu0 0
  %218 = vmatpush1.bf16.msra.mxu0 %v187
  %219 = vmatprep.subr.bf16.mxu0 0
  %220 = vmatpush2.bf16.msra.mxu0 0
  %221 = vmatprep.subr.bf16.mxu0 0
  %222 = vmatpush2.bf16.msra.mxu0 0
  %223 = vmatprep.subr.bf16.mxu0 0
  %224 = vmatpush2.bf16.msra.mxu0 0
  %225 = vmatprep.subr.bf16.mxu0 0
  %226 = vmatpush2.bf16.msra.mxu0 0
  %227 = vmatprep.subr.bf16.mxu0 0
  %228 = vmatpush2.bf16.msra.mxu0 0
  %229 = vmatprep.subr.bf16.mxu0 0
  %230 = vmatpush2.bf16.msra.mxu0 0
  %231 = vmatprep.subr.bf16.mxu0 0
  %232 = vmatpush2.bf16.msra.mxu0 0
  %233 = vmatprep.subr.bf16.mxu0 0
  %234 = vmatpush2.bf16.msra.mxu0 0
  %235 = vmatprep.mubr.bf16.mxu0 0
  %236 = vmatmul.mubr.bf16.gmra.mxu0 %v129
  %v237 = vpop.f32.mrf.mxu0
  %v238 = vadd.f32 %v153, %v237
  %v239 = vpop.f32.mrf.mxu0
  %v240 = vpop.f32.mrf.mxu0
  %v241 = vpop.f32.mrf.mxu0
  %242 = vdwg.mxu0
  %v243 = vmax.f32 %v238, 0.0
  %v244 = vpack.c.bf16 %v243, %v243
  %s245 = scalar_lea.vmem %s1, 128
  %v246 = vld [vmem:[%s245] sm:$0xf]
  %v247 = vld [vmem:[%s245 + $0x4] sm:$0xf]
  %v248 = vld [vmem:[%s245 + $0x8] sm:$0xf]
  %v249 = vld [vmem:[%s245 + $0xc] sm:$0xf]
  %v250 = vld [vmem:[%s245 + $0x10] sm:$0xf]
  %v251 = vld [vmem:[%s245 + $0x14] sm:$0xf]
  %v252 = vld [vmem:[%s245 + $0x18] sm:$0xf]
  %v253 = vld [vmem:[%s245 + $0x1c] sm:$0xf]
  %v254 = vld [vmem:[%s245 + $0x20] sm:$0xf]
  %v255 = vld [vmem:[%s245 + $0x24] sm:$0xf]
  %v256 = vld [vmem:[%s245 + $0x28] sm:$0xf]
  %v257 = vld [vmem:[%s245 + $0x2c] sm:$0xf]
  %v258 = vld [vmem:[%s245 + $0x30] sm:$0xf]
  %v259 = vld [vmem:[%s245 + $0x34] sm:$0xf]
  %v260 = vld [vmem:[%s245 + $0x38] sm:$0xf]
  %v261 = vld [vmem:[%s245 + $0x3c] sm:$0xf]
  %s262 = scalar_lea.vmem %s2, 2
  %v263 = vld [vmem:[%s262] sm:$0x1]
  %v265 = vlaneseq
  %v266 = vshrl.u32 %v265, 7
  %v267 = vsub.s32 0, %v266
  %v268 = vrot.slane %v263, %v267
  %v286 = vunpack.c.l.b16 %v246
  %v287 = vunpack.c.l.b16 %v247
  %v288 = vunpack.c.l.b16 %v248
  %v289 = vunpack.c.l.b16 %v249
  %v290 = vunpack.c.l.b16 %v250
  %v291 = vunpack.c.l.b16 %v251
  %v292 = vunpack.c.l.b16 %v252
  %v293 = vunpack.c.l.b16 %v253
  %v294 = vunpack.c.l.b16 %v254
  %v295 = vunpack.c.l.b16 %v255
  %v296 = vunpack.c.l.b16 %v256
  %v297 = vunpack.c.l.b16 %v257
  %v298 = vunpack.c.l.b16 %v258
  %v299 = vunpack.c.l.b16 %v259
  %v300 = vunpack.c.l.b16 %v260
  %v301 = vunpack.c.l.b16 %v261
  %v302 = vpack.c.b16 %v287, %v286
  %v303 = vpack.c.b16 %v289, %v288
  %v304 = vpack.c.b16 %v291, %v290
  %v305 = vpack.c.b16 %v293, %v292
  %v306 = vpack.c.b16 %v295, %v294
  %v307 = vpack.c.b16 %v297, %v296
  %v308 = vpack.c.b16 %v299, %v298
  %v309 = vpack.c.b16 %v301, %v300
  %318 = vmatprep.subr.bf16.mxu0 0
  %319 = vmatpush1.bf16.msra.mxu0 %v309
  %320 = vmatprep.subr.bf16.mxu0 0
  %321 = vmatpush1.bf16.msra.mxu0 %v308
  %322 = vmatprep.subr.bf16.mxu0 0
  %323 = vmatpush1.bf16.msra.mxu0 %v307
  %324 = vmatprep.subr.bf16.mxu0 0
  %325 = vmatpush1.bf16.msra.mxu0 %v306
  %326 = vmatprep.subr.bf16.mxu0 0
  %327 = vmatpush1.bf16.msra.mxu0 %v305
  %328 = vmatprep.subr.bf16.mxu0 0
  %329 = vmatpush1.bf16.msra.mxu0 %v304
  %330 = vmatprep.subr.bf16.mxu0 0
  %331 = vmatpush1.bf16.msra.mxu0 %v303
  %332 = vmatprep.subr.bf16.mxu0 0
  %333 = vmatpush1.bf16.msra.mxu0 %v302
  %334 = vmatprep.subr.bf16.mxu0 0
  %335 = vmatpush2.bf16.msra.mxu0 0
  %336 = vmatprep.subr.bf16.mxu0 0
  %337 = vmatpush2.bf16.msra.mxu0 0
  %338 = vmatprep.subr.bf16.mxu0 0
  %339 = vmatpush2.bf16.msra.mxu0 0
  %340 = vmatprep.subr.bf16.mxu0 0
  %341 = vmatpush2.bf16.msra.mxu0 0
  %342 = vmatprep.subr.bf16.mxu0 0
  %343 = vmatpush2.bf16.msra.mxu0 0
  %344 = vmatprep.subr.bf16.mxu0 0
  %345 = vmatpush2.bf16.msra.mxu0 0
  %346 = vmatprep.subr.bf16.mxu0 0
  %347 = vmatpush2.bf16.msra.mxu0 0
  %348 = vmatprep.subr.bf16.mxu0 0
  %349 = vmatpush2.bf16.msra.mxu0 0
  %350 = vmatprep.mubr.bf16.mxu0 0
  %351 = vmatmul.mubr.bf16.gmra.mxu0 %v244
  %v352 = vpop.f32.mrf.mxu0
  %v353 = vadd.f32 %v268, %v352
  %v354 = vpop.f32.mrf.mxu0
  %v355 = vpop.f32.mrf.mxu0
  %v356 = vpop.f32.mrf.mxu0
  %357 = vdwg.mxu0
  %v358 = vmax.f32 %v353, 0.0
  %v359 = vpack.c.bf16 %v358, %v358
  %s360 = scalar_lea.vmem %s1, 192
  %v361 = vld [vmem:[%s360] sm:$0xf]
  %v362 = vld [vmem:[%s360 + $0x4] sm:$0xf]
  %v363 = vld [vmem:[%s360 + $0x8] sm:$0xf]
  %v364 = vld [vmem:[%s360 + $0xc] sm:$0xf]
  %v365 = vld [vmem:[%s360 + $0x10] sm:$0xf]
  %v366 = vld [vmem:[%s360 + $0x14] sm:$0xf]
  %v367 = vld [vmem:[%s360 + $0x18] sm:$0xf]
  %v368 = vld [vmem:[%s360 + $0x1c] sm:$0xf]
  %v369 = vld [vmem:[%s360 + $0x20] sm:$0xf]
  %v370 = vld [vmem:[%s360 + $0x24] sm:$0xf]
  %v371 = vld [vmem:[%s360 + $0x28] sm:$0xf]
  %v372 = vld [vmem:[%s360 + $0x2c] sm:$0xf]
  %v373 = vld [vmem:[%s360 + $0x30] sm:$0xf]
  %v374 = vld [vmem:[%s360 + $0x34] sm:$0xf]
  %v375 = vld [vmem:[%s360 + $0x38] sm:$0xf]
  %v376 = vld [vmem:[%s360 + $0x3c] sm:$0xf]
  %s377 = scalar_lea.vmem %s2, 3
  %v378 = vld [vmem:[%s377] sm:$0x1]
  %v380 = vlaneseq
  %v381 = vshrl.u32 %v380, 7
  %v382 = vsub.s32 0, %v381
  %v383 = vrot.slane %v378, %v382
  %v401 = vunpack.c.l.b16 %v361
  %v402 = vunpack.c.l.b16 %v362
  %v403 = vunpack.c.l.b16 %v363
  %v404 = vunpack.c.l.b16 %v364
  %v405 = vunpack.c.l.b16 %v365
  %v406 = vunpack.c.l.b16 %v366
  %v407 = vunpack.c.l.b16 %v367
  %v408 = vunpack.c.l.b16 %v368
  %v409 = vunpack.c.l.b16 %v369
  %v410 = vunpack.c.l.b16 %v370
  %v411 = vunpack.c.l.b16 %v371
  %v412 = vunpack.c.l.b16 %v372
  %v413 = vunpack.c.l.b16 %v373
  %v414 = vunpack.c.l.b16 %v374
  %v415 = vunpack.c.l.b16 %v375
  %v416 = vunpack.c.l.b16 %v376
  %v417 = vpack.c.b16 %v402, %v401
  %v418 = vpack.c.b16 %v404, %v403
  %v419 = vpack.c.b16 %v406, %v405
  %v420 = vpack.c.b16 %v408, %v407
  %v421 = vpack.c.b16 %v410, %v409
  %v422 = vpack.c.b16 %v412, %v411
  %v423 = vpack.c.b16 %v414, %v413
  %v424 = vpack.c.b16 %v416, %v415
  %433 = vmatprep.subr.bf16.mxu0 0
  %434 = vmatpush1.bf16.msra.mxu0 %v424
  %435 = vmatprep.subr.bf16.mxu0 0
  %436 = vmatpush1.bf16.msra.mxu0 %v423
  %437 = vmatprep.subr.bf16.mxu0 0
  %438 = vmatpush1.bf16.msra.mxu0 %v422
  %439 = vmatprep.subr.bf16.mxu0 0
  %440 = vmatpush1.bf16.msra.mxu0 %v421
  %441 = vmatprep.subr.bf16.mxu0 0
  %442 = vmatpush1.bf16.msra.mxu0 %v420
  %443 = vmatprep.subr.bf16.mxu0 0
  %444 = vmatpush1.bf16.msra.mxu0 %v419
  %445 = vmatprep.subr.bf16.mxu0 0
  %446 = vmatpush1.bf16.msra.mxu0 %v418
  %447 = vmatprep.subr.bf16.mxu0 0
  %448 = vmatpush1.bf16.msra.mxu0 %v417
  %449 = vmatprep.subr.bf16.mxu0 0
  %450 = vmatpush2.bf16.msra.mxu0 0
  %451 = vmatprep.subr.bf16.mxu0 0
  %452 = vmatpush2.bf16.msra.mxu0 0
  %453 = vmatprep.subr.bf16.mxu0 0
  %454 = vmatpush2.bf16.msra.mxu0 0
  %455 = vmatprep.subr.bf16.mxu0 0
  %456 = vmatpush2.bf16.msra.mxu0 0
  %457 = vmatprep.subr.bf16.mxu0 0
  %458 = vmatpush2.bf16.msra.mxu0 0
  %459 = vmatprep.subr.bf16.mxu0 0
  %460 = vmatpush2.bf16.msra.mxu0 0
  %461 = vmatprep.subr.bf16.mxu0 0
  %462 = vmatpush2.bf16.msra.mxu0 0
  %463 = vmatprep.subr.bf16.mxu0 0
  %464 = vmatpush2.bf16.msra.mxu0 0
  %465 = vmatprep.mubr.bf16.mxu0 0
  %466 = vmatmul.mubr.bf16.gmra.mxu0 %v359
  %v467 = vpop.f32.mrf.mxu0
  %v468 = vadd.f32 %v383, %v467
  %v469 = vpop.f32.mrf.mxu0
  %v470 = vpop.f32.mrf.mxu0
  %v471 = vpop.f32.mrf.mxu0
  %472 = vdwg.mxu0
  %v473 = vpack.c.bf16 %v468, %v468
  %s474 = scalar_lea.vmem %s1, 256
  %v475 = vld [vmem:[%s474] sm:$0xf]
  %v476 = vld [vmem:[%s474 + $0x4] sm:$0xf]
  %v477 = vld [vmem:[%s474 + $0x8] sm:$0xf]
  %v478 = vld [vmem:[%s474 + $0xc] sm:$0xf]
  %v479 = vld [vmem:[%s474 + $0x10] sm:$0xf]
  %v480 = vld [vmem:[%s474 + $0x14] sm:$0xf]
  %v481 = vld [vmem:[%s474 + $0x18] sm:$0xf]
  %v482 = vld [vmem:[%s474 + $0x1c] sm:$0xf]
  %v483 = vld [vmem:[%s474 + $0x20] sm:$0xf]
  %v484 = vld [vmem:[%s474 + $0x24] sm:$0xf]
  %v485 = vld [vmem:[%s474 + $0x28] sm:$0xf]
  %v486 = vld [vmem:[%s474 + $0x2c] sm:$0xf]
  %v487 = vld [vmem:[%s474 + $0x30] sm:$0xf]
  %v488 = vld [vmem:[%s474 + $0x34] sm:$0xf]
  %v489 = vld [vmem:[%s474 + $0x38] sm:$0xf]
  %v490 = vld [vmem:[%s474 + $0x3c] sm:$0xf]
  %s491 = scalar_lea.vmem %s2, 4
  %v492 = vld [vmem:[%s491] sm:$0x1]
  %v494 = vlaneseq
  %v495 = vshrl.u32 %v494, 7
  %v496 = vsub.s32 0, %v495
  %v497 = vrot.slane %v492, %v496
  %v515 = vunpack.c.l.b16 %v475
  %v516 = vunpack.c.l.b16 %v476
  %v517 = vunpack.c.l.b16 %v477
  %v518 = vunpack.c.l.b16 %v478
  %v519 = vunpack.c.l.b16 %v479
  %v520 = vunpack.c.l.b16 %v480
  %v521 = vunpack.c.l.b16 %v481
  %v522 = vunpack.c.l.b16 %v482
  %v523 = vunpack.c.l.b16 %v483
  %v524 = vunpack.c.l.b16 %v484
  %v525 = vunpack.c.l.b16 %v485
  %v526 = vunpack.c.l.b16 %v486
  %v527 = vunpack.c.l.b16 %v487
  %v528 = vunpack.c.l.b16 %v488
  %v529 = vunpack.c.l.b16 %v489
  %v530 = vunpack.c.l.b16 %v490
  %v531 = vpack.c.b16 %v516, %v515
  %v532 = vpack.c.b16 %v518, %v517
  %v533 = vpack.c.b16 %v520, %v519
  %v534 = vpack.c.b16 %v522, %v521
  %v535 = vpack.c.b16 %v524, %v523
  %v536 = vpack.c.b16 %v526, %v525
  %v537 = vpack.c.b16 %v528, %v527
  %v538 = vpack.c.b16 %v530, %v529
  %547 = vmatprep.subr.bf16.mxu0 0
  %548 = vmatpush1.bf16.msra.mxu0 %v538
  %549 = vmatprep.subr.bf16.mxu0 0
  %550 = vmatpush1.bf16.msra.mxu0 %v537
  %551 = vmatprep.subr.bf16.mxu0 0
  %552 = vmatpush1.bf16.msra.mxu0 %v536
  %553 = vmatprep.subr.bf16.mxu0 0
  %554 = vmatpush1.bf16.msra.mxu0 %v535
  %555 = vmatprep.subr.bf16.mxu0 0
  %556 = vmatpush1.bf16.msra.mxu0 %v534
  %557 = vmatprep.subr.bf16.mxu0 0
  %558 = vmatpush1.bf16.msra.mxu0 %v533
  %559 = vmatprep.subr.bf16.mxu0 0
  %560 = vmatpush1.bf16.msra.mxu0 %v532
  %561 = vmatprep.subr.bf16.mxu0 0
  %562 = vmatpush1.bf16.msra.mxu0 %v531
  %563 = vmatprep.subr.bf16.mxu0 0
  %564 = vmatpush2.bf16.msra.mxu0 0
  %565 = vmatprep.subr.bf16.mxu0 0
  %566 = vmatpush2.bf16.msra.mxu0 0
  %567 = vmatprep.subr.bf16.mxu0 0
  %568 = vmatpush2.bf16.msra.mxu0 0
  %569 = vmatprep.subr.bf16.mxu0 0
  %570 = vmatpush2.bf16.msra.mxu0 0
  %571 = vmatprep.subr.bf16.mxu0 0
  %572 = vmatpush2.bf16.msra.mxu0 0
  %573 = vmatprep.subr.bf16.mxu0 0
  %574 = vmatpush2.bf16.msra.mxu0 0
  %575 = vmatprep.subr.bf16.mxu0 0
  %576 = vmatpush2.bf16.msra.mxu0 0
  %577 = vmatprep.subr.bf16.mxu0 0
  %578 = vmatpush2.bf16.msra.mxu0 0
  %579 = vmatprep.mubr.bf16.mxu0 0
  %580 = vmatmul.mubr.bf16.gmra.mxu0 %v473
  %v581 = vpop.f32.mrf.mxu0
  %v582 = vadd.f32 %v497, %v581
  %v583 = vpop.f32.mrf.mxu0
  %v584 = vpop.f32.mrf.mxu0
  %v585 = vpop.f32.mrf.mxu0
  %586 = vdwg.mxu0
  %v587 = vmax.f32 %v582, 0.0
  %v588 = vpack.c.bf16 %v587, %v587
  %s589 = scalar_lea.vmem %s1, 320
  %v590 = vld [vmem:[%s589] sm:$0xf]
  %v591 = vld [vmem:[%s589 + $0x4] sm:$0xf]
  %v592 = vld [vmem:[%s589 + $0x8] sm:$0xf]
  %v593 = vld [vmem:[%s589 + $0xc] sm:$0xf]
  %v594 = vld [vmem:[%s589 + $0x10] sm:$0xf]
  %v595 = vld [vmem:[%s589 + $0x14] sm:$0xf]
  %v596 = vld [vmem:[%s589 + $0x18] sm:$0xf]
  %v597 = vld [vmem:[%s589 + $0x1c] sm:$0xf]
  %v598 = vld [vmem:[%s589 + $0x20] sm:$0xf]
  %v599 = vld [vmem:[%s589 + $0x24] sm:$0xf]
  %v600 = vld [vmem:[%s589 + $0x28] sm:$0xf]
  %v601 = vld [vmem:[%s589 + $0x2c] sm:$0xf]
  %v602 = vld [vmem:[%s589 + $0x30] sm:$0xf]
  %v603 = vld [vmem:[%s589 + $0x34] sm:$0xf]
  %v604 = vld [vmem:[%s589 + $0x38] sm:$0xf]
  %v605 = vld [vmem:[%s589 + $0x3c] sm:$0xf]
  %s606 = scalar_lea.vmem %s2, 5
  %v607 = vld [vmem:[%s606] sm:$0x1]
  %v609 = vlaneseq
  %v610 = vshrl.u32 %v609, 7
  %v611 = vsub.s32 0, %v610
  %v612 = vrot.slane %v607, %v611
  %v630 = vunpack.c.l.b16 %v590
  %v631 = vunpack.c.l.b16 %v591
  %v632 = vunpack.c.l.b16 %v592
  %v633 = vunpack.c.l.b16 %v593
  %v634 = vunpack.c.l.b16 %v594
  %v635 = vunpack.c.l.b16 %v595
  %v636 = vunpack.c.l.b16 %v596
  %v637 = vunpack.c.l.b16 %v597
  %v638 = vunpack.c.l.b16 %v598
  %v639 = vunpack.c.l.b16 %v599
  %v640 = vunpack.c.l.b16 %v600
  %v641 = vunpack.c.l.b16 %v601
  %v642 = vunpack.c.l.b16 %v602
  %v643 = vunpack.c.l.b16 %v603
  %v644 = vunpack.c.l.b16 %v604
  %v645 = vunpack.c.l.b16 %v605
  %v646 = vpack.c.b16 %v631, %v630
  %v647 = vpack.c.b16 %v633, %v632
  %v648 = vpack.c.b16 %v635, %v634
  %v649 = vpack.c.b16 %v637, %v636
  %v650 = vpack.c.b16 %v639, %v638
  %v651 = vpack.c.b16 %v641, %v640
  %v652 = vpack.c.b16 %v643, %v642
  %v653 = vpack.c.b16 %v645, %v644
  %662 = vmatprep.subr.bf16.mxu0 0
  %663 = vmatpush1.bf16.msra.mxu0 %v653
  %664 = vmatprep.subr.bf16.mxu0 0
  %665 = vmatpush1.bf16.msra.mxu0 %v652
  %666 = vmatprep.subr.bf16.mxu0 0
  %667 = vmatpush1.bf16.msra.mxu0 %v651
  %668 = vmatprep.subr.bf16.mxu0 0
  %669 = vmatpush1.bf16.msra.mxu0 %v650
  %670 = vmatprep.subr.bf16.mxu0 0
  %671 = vmatpush1.bf16.msra.mxu0 %v649
  %672 = vmatprep.subr.bf16.mxu0 0
  %673 = vmatpush1.bf16.msra.mxu0 %v648
  %674 = vmatprep.subr.bf16.mxu0 0
  %675 = vmatpush1.bf16.msra.mxu0 %v647
  %676 = vmatprep.subr.bf16.mxu0 0
  %677 = vmatpush1.bf16.msra.mxu0 %v646
  %678 = vmatprep.subr.bf16.mxu0 0
  %679 = vmatpush2.bf16.msra.mxu0 0
  %680 = vmatprep.subr.bf16.mxu0 0
  %681 = vmatpush2.bf16.msra.mxu0 0
  %682 = vmatprep.subr.bf16.mxu0 0
  %683 = vmatpush2.bf16.msra.mxu0 0
  %684 = vmatprep.subr.bf16.mxu0 0
  %685 = vmatpush2.bf16.msra.mxu0 0
  %686 = vmatprep.subr.bf16.mxu0 0
  %687 = vmatpush2.bf16.msra.mxu0 0
  %688 = vmatprep.subr.bf16.mxu0 0
  %689 = vmatpush2.bf16.msra.mxu0 0
  %690 = vmatprep.subr.bf16.mxu0 0
  %691 = vmatpush2.bf16.msra.mxu0 0
  %692 = vmatprep.subr.bf16.mxu0 0
  %693 = vmatpush2.bf16.msra.mxu0 0
  %694 = vmatprep.mubr.bf16.mxu0 0
  %695 = vmatmul.mubr.bf16.gmra.mxu0 %v588
  %v696 = vpop.f32.mrf.mxu0
  %v697 = vadd.f32 %v612, %v696
  %v698 = vpop.f32.mrf.mxu0
  %v699 = vpop.f32.mrf.mxu0
  %v700 = vpop.f32.mrf.mxu0
  %701 = vdwg.mxu0
  %v702 = vmax.f32 %v697, 0.0
  %v703 = vpack.c.bf16 %v702, %v702
  %s704 = scalar_lea.vmem %s1, 384
  %v705 = vld [vmem:[%s704] sm:$0xf]
  %v706 = vld [vmem:[%s704 + $0x4] sm:$0xf]
  %v707 = vld [vmem:[%s704 + $0x8] sm:$0xf]
  %v708 = vld [vmem:[%s704 + $0xc] sm:$0xf]
  %v709 = vld [vmem:[%s704 + $0x10] sm:$0xf]
  %v710 = vld [vmem:[%s704 + $0x14] sm:$0xf]
  %v711 = vld [vmem:[%s704 + $0x18] sm:$0xf]
  %v712 = vld [vmem:[%s704 + $0x1c] sm:$0xf]
  %v713 = vld [vmem:[%s704 + $0x20] sm:$0xf]
  %v714 = vld [vmem:[%s704 + $0x24] sm:$0xf]
  %v715 = vld [vmem:[%s704 + $0x28] sm:$0xf]
  %v716 = vld [vmem:[%s704 + $0x2c] sm:$0xf]
  %v717 = vld [vmem:[%s704 + $0x30] sm:$0xf]
  %v718 = vld [vmem:[%s704 + $0x34] sm:$0xf]
  %v719 = vld [vmem:[%s704 + $0x38] sm:$0xf]
  %v720 = vld [vmem:[%s704 + $0x3c] sm:$0xf]
  %s721 = scalar_lea.vmem %s2, 6
  %v722 = vld [vmem:[%s721] sm:$0x1]
  %v724 = vlaneseq
  %v725 = vshrl.u32 %v724, 7
  %v726 = vsub.s32 0, %v725
  %v727 = vrot.slane %v722, %v726
  %v745 = vunpack.c.l.b16 %v705
  %v746 = vunpack.c.l.b16 %v706
  %v747 = vunpack.c.l.b16 %v707
  %v748 = vunpack.c.l.b16 %v708
  %v749 = vunpack.c.l.b16 %v709
  %v750 = vunpack.c.l.b16 %v710
  %v751 = vunpack.c.l.b16 %v711
  %v752 = vunpack.c.l.b16 %v712
  %v753 = vunpack.c.l.b16 %v713
  %v754 = vunpack.c.l.b16 %v714
  %v755 = vunpack.c.l.b16 %v715
  %v756 = vunpack.c.l.b16 %v716
  %v757 = vunpack.c.l.b16 %v717
  %v758 = vunpack.c.l.b16 %v718
  %v759 = vunpack.c.l.b16 %v719
  %v760 = vunpack.c.l.b16 %v720
  %v761 = vpack.c.b16 %v746, %v745
  %v762 = vpack.c.b16 %v748, %v747
  %v763 = vpack.c.b16 %v750, %v749
  %v764 = vpack.c.b16 %v752, %v751
  %v765 = vpack.c.b16 %v754, %v753
  %v766 = vpack.c.b16 %v756, %v755
  %v767 = vpack.c.b16 %v758, %v757
  %v768 = vpack.c.b16 %v760, %v759
  %777 = vmatprep.subr.bf16.mxu0 0
  %778 = vmatpush1.bf16.msra.mxu0 %v768
  %779 = vmatprep.subr.bf16.mxu0 0
  %780 = vmatpush1.bf16.msra.mxu0 %v767
  %781 = vmatprep.subr.bf16.mxu0 0
  %782 = vmatpush1.bf16.msra.mxu0 %v766
  %783 = vmatprep.subr.bf16.mxu0 0
  %784 = vmatpush1.bf16.msra.mxu0 %v765
  %785 = vmatprep.subr.bf16.mxu0 0
  %786 = vmatpush1.bf16.msra.mxu0 %v764
  %787 = vmatprep.subr.bf16.mxu0 0
  %788 = vmatpush1.bf16.msra.mxu0 %v763
  %789 = vmatprep.subr.bf16.mxu0 0
  %790 = vmatpush1.bf16.msra.mxu0 %v762
  %791 = vmatprep.subr.bf16.mxu0 0
  %792 = vmatpush1.bf16.msra.mxu0 %v761
  %793 = vmatprep.subr.bf16.mxu0 0
  %794 = vmatpush2.bf16.msra.mxu0 0
  %795 = vmatprep.subr.bf16.mxu0 0
  %796 = vmatpush2.bf16.msra.mxu0 0
  %797 = vmatprep.subr.bf16.mxu0 0
  %798 = vmatpush2.bf16.msra.mxu0 0
  %799 = vmatprep.subr.bf16.mxu0 0
  %800 = vmatpush2.bf16.msra.mxu0 0
  %801 = vmatprep.subr.bf16.mxu0 0
  %802 = vmatpush2.bf16.msra.mxu0 0
  %803 = vmatprep.subr.bf16.mxu0 0
  %804 = vmatpush2.bf16.msra.mxu0 0
  %805 = vmatprep.subr.bf16.mxu0 0
  %806 = vmatpush2.bf16.msra.mxu0 0
  %807 = vmatprep.subr.bf16.mxu0 0
  %808 = vmatpush2.bf16.msra.mxu0 0
  %809 = vmatprep.mubr.bf16.mxu0 0
  %810 = vmatmul.mubr.bf16.gmra.mxu0 %v703
  %v811 = vpop.f32.mrf.mxu0
  %v812 = vadd.f32 %v727, %v811
  %v813 = vpop.f32.mrf.mxu0
  %v814 = vpop.f32.mrf.mxu0
  %v815 = vpop.f32.mrf.mxu0
  %816 = vdwg.mxu0
  %v817 = vmax.f32 %v812, 0.0
  %v818 = vpack.c.bf16 %v817, %v817
  %s819 = scalar_lea.vmem %s1, 448
  %v820 = vld [vmem:[%s819] sm:$0xf]
  %v821 = vld [vmem:[%s819 + $0x4] sm:$0xf]
  %v822 = vld [vmem:[%s819 + $0x8] sm:$0xf]
  %v823 = vld [vmem:[%s819 + $0xc] sm:$0xf]
  %v824 = vld [vmem:[%s819 + $0x10] sm:$0xf]
  %v825 = vld [vmem:[%s819 + $0x14] sm:$0xf]
  %v826 = vld [vmem:[%s819 + $0x18] sm:$0xf]
  %v827 = vld [vmem:[%s819 + $0x1c] sm:$0xf]
  %v828 = vld [vmem:[%s819 + $0x20] sm:$0xf]
  %v829 = vld [vmem:[%s819 + $0x24] sm:$0xf]
  %v830 = vld [vmem:[%s819 + $0x28] sm:$0xf]
  %v831 = vld [vmem:[%s819 + $0x2c] sm:$0xf]
  %v832 = vld [vmem:[%s819 + $0x30] sm:$0xf]
  %v833 = vld [vmem:[%s819 + $0x34] sm:$0xf]
  %v834 = vld [vmem:[%s819 + $0x38] sm:$0xf]
  %v835 = vld [vmem:[%s819 + $0x3c] sm:$0xf]
  %s836 = scalar_lea.vmem %s2, 7
  %v837 = vld [vmem:[%s836] sm:$0x1]
  %v839 = vlaneseq
  %v840 = vshrl.u32 %v839, 7
  %v841 = vsub.s32 0, %v840
  %v842 = vrot.slane %v837, %v841
  %v860 = vunpack.c.l.b16 %v820
  %v861 = vunpack.c.l.b16 %v821
  %v862 = vunpack.c.l.b16 %v822
  %v863 = vunpack.c.l.b16 %v823
  %v864 = vunpack.c.l.b16 %v824
  %v865 = vunpack.c.l.b16 %v825
  %v866 = vunpack.c.l.b16 %v826
  %v867 = vunpack.c.l.b16 %v827
  %v868 = vunpack.c.l.b16 %v828
  %v869 = vunpack.c.l.b16 %v829
  %v870 = vunpack.c.l.b16 %v830
  %v871 = vunpack.c.l.b16 %v831
  %v872 = vunpack.c.l.b16 %v832
  %v873 = vunpack.c.l.b16 %v833
  %v874 = vunpack.c.l.b16 %v834
  %v875 = vunpack.c.l.b16 %v835
  %v876 = vpack.c.b16 %v861, %v860
  %v877 = vpack.c.b16 %v863, %v862
  %v878 = vpack.c.b16 %v865, %v864
  %v879 = vpack.c.b16 %v867, %v866
  %v880 = vpack.c.b16 %v869, %v868
  %v881 = vpack.c.b16 %v871, %v870
  %v882 = vpack.c.b16 %v873, %v872
  %v883 = vpack.c.b16 %v875, %v874
  %892 = vmatprep.subr.bf16.mxu0 0
  %893 = vmatpush1.bf16.msra.mxu0 %v883
  %894 = vmatprep.subr.bf16.mxu0 0
  %895 = vmatpush1.bf16.msra.mxu0 %v882
  %896 = vmatprep.subr.bf16.mxu0 0
  %897 = vmatpush1.bf16.msra.mxu0 %v881
  %898 = vmatprep.subr.bf16.mxu0 0
  %899 = vmatpush1.bf16.msra.mxu0 %v880
  %900 = vmatprep.subr.bf16.mxu0 0
  %901 = vmatpush1.bf16.msra.mxu0 %v879
  %902 = vmatprep.subr.bf16.mxu0 0
  %903 = vmatpush1.bf16.msra.mxu0 %v878
  %904 = vmatprep.subr.bf16.mxu0 0
  %905 = vmatpush1.bf16.msra.mxu0 %v877
  %906 = vmatprep.subr.bf16.mxu0 0
  %907 = vmatpush1.bf16.msra.mxu0 %v876
  %908 = vmatprep.subr.bf16.mxu0 0
  %909 = vmatpush2.bf16.msra.mxu0 0
  %910 = vmatprep.subr.bf16.mxu0 0
  %911 = vmatpush2.bf16.msra.mxu0 0
  %912 = vmatprep.subr.bf16.mxu0 0
  %913 = vmatpush2.bf16.msra.mxu0 0
  %914 = vmatprep.subr.bf16.mxu0 0
  %915 = vmatpush2.bf16.msra.mxu0 0
  %916 = vmatprep.subr.bf16.mxu0 0
  %917 = vmatpush2.bf16.msra.mxu0 0
  %918 = vmatprep.subr.bf16.mxu0 0
  %919 = vmatpush2.bf16.msra.mxu0 0
  %920 = vmatprep.subr.bf16.mxu0 0
  %921 = vmatpush2.bf16.msra.mxu0 0
  %922 = vmatprep.subr.bf16.mxu0 0
  %923 = vmatpush2.bf16.msra.mxu0 0
  %924 = vmatprep.mubr.bf16.mxu0 0
  %925 = vmatmul.mubr.bf16.gmra.mxu0 %v818
  %v926 = vpop.f32.mrf.mxu0
  %v927 = vadd.f32 %v842, %v926
  %v928 = vpop.f32.mrf.mxu0
  %v929 = vpop.f32.mrf.mxu0
  %v930 = vpop.f32.mrf.mxu0
  %931 = vdwg.mxu0
  %932 = vst [vmem:[%s3] sm:$0xff] %v927
  %933 = vst [vmem:[%s3 + $0x8] sm:$0xff] %v128
  %934 = vst [vmem:[%s3 + $0x10] sm:$0xff] %v243
  %935 = vst [vmem:[%s3 + $0x18] sm:$0xff] %v358
  %936 = vst [vmem:[%s3 + $0x20] sm:$0xff] %v468
  // Predicated region
  $region14: #{ae_forward.1} parent=0 // pred_check
    _
  $region15: #{ae_forward.1} parent=0 // pred_check_branch
    %938 = sbr.rel (0) target = $region17
  $region16: #{ae_forward.1} parent=0 // pred_region
    _
  $region17: #{ae_forward.1} parent=0 // pred_fallthru
    _
  // Predicated region
  $region18: #{ae_forward.1} parent=0 // pred_check
    _
  $region19: #{ae_forward.1} parent=0 // pred_check_branch
    %940 = sbr.rel (0) target = $region21
  $region20: #{ae_forward.1} parent=0 // pred_region
    _
  $region21: #{ae_forward.1} parent=0 // pred_fallthru
    _

</llo_original>
